<compile_context>
chip_gen: v5e
topology: v5e:2x2
jax: 0.10.0
libtpu: 0.0.40
codegen_flags: <defaults>
</compile_context>

<pallas_src>
import functools

import jax
import jax.numpy as jnp
from jax.experimental import pallas as pl
from jax.experimental.pallas import tpu as pltpu

_MIB = 1024 * 1024


def _round_up(x, m):
    return (x + m - 1) // m * m


def _tpu_generation():
    """Best-effort TPU generation + physical VMEM bytes per TensorCore."""
    kind = ""
    try:
        kind = jax.devices()[0].device_kind.lower()
    except Exception:
        pass
    if "7" in kind:
        gen = "v7x"
    elif "v6" in kind:
        gen = "v6e"
    elif "v5e" in kind or "v5 lite" in kind or "v5lite" in kind:
        gen = "v5e"
    else:
        gen = "v6e"  # default to the 128-MiB-VMEM class
    vmem = None
    try:
        vmem = getattr(pltpu.get_tpu_info(), "vmem_capacity_bytes", None)
    except Exception:
        vmem = None
    if vmem is None:
        vmem = 64 * _MIB if gen == "v7x" else 128 * _MIB
    return gen, int(vmem)


def _vmem_estimate_bytes(tile_rows, d_model_p, tk_ff):
    """Conservative VMEM footprint for one tiling choice."""
    x_blk = tile_rows * d_model_p * 2      # bf16 activations
    o_blk = tile_rows * d_model_p * 4      # f32 output / accumulator
    w1_blk = d_model_p * tk_ff * 2         # bf16 W1 slice
    w2_blk = tk_ff * d_model_p * 2         # bf16 W2 slice
    b_blk = (tk_ff + d_model_p) * 4
    pipelined = 2 * (x_blk + w1_blk + w2_blk + b_blk + o_blk)   # double-buffered
    h_tmp = tile_rows * tk_ff * 6          # f32 h intermediate + bf16 copy
    return pipelined + h_tmp


def _choose_tiles(rows, d_model_p, d_ff_p, gen, budget):
    """Pick (tile_rows, tk_ff) for the generation under a VMEM budget."""
    pref = {"v5e": 512, "v6e": 1024, "v7x": 512}.get(gen, 512)
    tile_rows = min(pref, _round_up(rows, 8))
    if gen == "v7x" and rows > 256:
        # Keep >= 2 row tiles so the "parallel" row axis spans both TensorCores.
        tile_rows = min(tile_rows, max(8, _round_up((rows + 1) // 2, 8)))

    # Reduction-slice candidates (widest first).  A full-d_ff slice means the
    # weight block indices are constant -> W1/W2 are DMA'd exactly once.
    w_resident_bytes = 2 * (2 * d_model_p * d_ff_p)          # bf16 W1 + W2
    resident_cap = (12 * _MIB) if gen == "v7x" else (24 * _MIB)
    cands = []
    if w_resident_bytes <= resident_cap:
        cands.append(d_ff_p)
    for c in (1024, 512, 256, 128):
        if c <= d_ff_p and d_ff_p % c == 0 and c not in cands:
            cands.append(c)
    if not cands:
        cands.append(d_ff_p)

    for tk in cands:
        tr = tile_rows
        while True:
            if _vmem_estimate_bytes(tr, d_model_p, tk) <= budget:
                return tr, tk
            if tr <= 8:
                break
            tr = max(8, _round_up(tr // 2, 8))
    return 8, cands[-1]          # last resort; always valid


def _ffn_kernel(x_ref, w1_ref, b1_ref, w2_ref, b2_ref, o_ref, *, bf16_h):
    # Grid: (row tiles "parallel", d_ff slices "arbitrary").
    # x_ref:  (tile_rows, d_model_p) bf16   index (i, 0)  -- resident across k
    # w1_ref: (d_model_p, tk_ff)    bf16    index (0, k)
    # b1_ref: (1, tk_ff)            f32/bf16 index (0, k)
    # w2_ref: (tk_ff, d_model_p)    bf16    index (k, 0)
    # b2_ref: (1, d_model_p)        f32     index (0, 0)
    # o_ref:  (tile_rows, d_model_p) f32    index (i, 0)  -- VMEM-resident
    #                                        accumulator across the k axis.
    k = pl.program_id(1)

    @pl.when(k == 0)
    def _():
        # Initialize the resident output block with the broadcast second bias.
        o_ref[...] = jnp.broadcast_to(b2_ref[...], o_ref.shape).astype(o_ref.dtype)

    # h = relu(x @ W1[:, k] + b1[k]); dropout (eval mode) == identity.
    h = jnp.dot(x_ref[...], w1_ref[...], preferred_element_type=jnp.float32)
    if bf16_h:
        # v6e/v7x have a bf16 VALU path: bias add + ReLU in bf16.
        h = jnp.maximum(h.astype(jnp.bfloat16) + b1_ref[...], 0)
    else:
        # v5e has no bf16 VPU: keep the elementwise math in f32.
        h = jnp.maximum(h + b1_ref[...], 0.0).astype(jnp.bfloat16)

    # o += h @ W2[k, :]   (f32 accumulate directly in the output block)
    o_ref[...] += jnp.dot(h, w2_ref[...], preferred_element_type=jnp.float32)


@functools.partial(jax.jit, static_argnames=("tile_rows", "tk_ff"))
def feed_forward(x, w1, b1, w2, b2, *, tile_rows=None, tk_ff=None):
    """x: (batch, seq, d_model) -> (batch, seq, d_model) f32.

    w1: (d_model, d_ff), b1: (1, d_ff), w2: (d_ff, d_model), b2: (1, d_model).
    (Weights stored transposed vs. PyTorch so the kernel computes x @ W + b.)
    Inputs are cast to bf16 for the MXU; accumulation is f32.
    """
    batch, seq, d_model = x.shape
    d_ff = w1.shape[1]
    rows = batch * seq

    gen, vmem_phys = _tpu_generation()
    # Generation-aware scoped-VMEM limit with headroom under the physical cap.
    vmem_limit = 52 * _MIB if vmem_phys <= 64 * _MIB else 100 * _MIB
    budget = int(vmem_limit * 0.85)

    # v6e/v7x MXUs are 2x256x256 -> prefer 256-aligned K/N; v5e is fine at 128.
    align = 256 if gen in ("v6e", "v7x") else 128
    d_model_p = _round_up(d_model, align)
    d_ff_p = _round_up(d_ff, align)

    auto_tr, auto_tk = _choose_tiles(rows, d_model_p, d_ff_p, gen, budget)
    if tile_rows is None:
        tile_rows = auto_tr
    if tk_ff is None:
        tk_ff = auto_tk
    assert tile_rows % 8 == 0 and d_ff_p % tk_ff == 0

    rows_p = _round_up(rows, tile_rows)
    bf16_h = gen in ("v6e", "v7x")

    # --- pad + cast operands (bf16 MXU operands, f32 accumulation) ------------
    x2 = x.reshape(rows, d_model).astype(jnp.bfloat16)
    x2 = jnp.pad(x2, ((0, rows_p - rows), (0, d_model_p - d_model)))
    w1p = jnp.pad(w1, ((0, d_model_p - d_model), (0, d_ff_p - d_ff))).astype(jnp.bfloat16)
    w2p = jnp.pad(w2, ((0, d_ff_p - d_ff), (0, d_model_p - d_model))).astype(jnp.bfloat16)
    b1p = jnp.pad(b1, ((0, 0), (0, d_ff_p - d_ff)))
    if bf16_h:
        b1p = b1p.astype(jnp.bfloat16)
    b2p = jnp.pad(b2, ((0, 0), (0, d_model_p - d_model)))

    grid = (rows_p // tile_rows, d_ff_p // tk_ff)
    kernel = functools.partial(_ffn_kernel, bf16_h=bf16_h)

    out2 = pl.pallas_call(
        kernel,
        out_shape=jax.ShapeDtypeStruct((rows_p, d_model_p), jnp.float32),
        grid_spec=pltpu.PrefetchScalarGridSpec(
            num_scalar_prefetch=0,
            grid=grid,
            in_specs=[
                pl.BlockSpec((tile_rows, d_model_p), lambda i, k: (i, 0)),  # x rows
                pl.BlockSpec((d_model_p, tk_ff), lambda i, k: (0, k)),      # W1 slice
                pl.BlockSpec((1, tk_ff), lambda i, k: (0, k)),              # b1 slice
                pl.BlockSpec((tk_ff, d_model_p), lambda i, k: (k, 0)),      # W2 slice
                pl.BlockSpec((1, d_model_p), lambda i, k: (0, 0)),          # b2
            ],
            out_specs=pl.BlockSpec((tile_rows, d_model_p), lambda i, k: (i, 0)),
        ),
        compiler_params=pltpu.CompilerParams(
            dimension_semantics=("parallel", "arbitrary"),
            vmem_limit_bytes=vmem_limit,
        ),
    )(x2, w1p, b1p, w2p, b2p)

    out2 = out2[:rows, :d_model]
    return out2.reshape(batch, seq, d_model).astype(jnp.float32)


def init_params(key, d_model, d_ff):
    """Deterministic init mirroring nn.Linear shapes (weights stored transposed)."""
    k1, k2, k3, k4 = jax.random.split(key, 4)
    bound1 = 1.0 / jnp.sqrt(float(d_model))
    bound2 = 1.0 / jnp.sqrt(float(d_ff))
    w1 = jax.random.uniform(k1, (d_model, d_ff), jnp.float32, -bound1, bound1)
    b1 = jax.random.uniform(k2, (1, d_ff), jnp.float32, -bound1, bound1)
    w2 = jax.random.uniform(k3, (d_ff, d_model), jnp.float32, -bound2, bound2)
    b2 = jax.random.uniform(k4, (1, d_model), jnp.float32, -bound2, bound2)
    return w1, b1, w2, b2


if __name__ == "__main__":
    batch, seq, d_model, d_ff = 2, 8, 32, 64

    key = jax.random.PRNGKey(0)
    kx, kp = jax.random.split(key)
    x = jax.random.normal(kx, (batch, seq, d_model), jnp.float32)
    w1, b1, w2, b2 = init_params(kp, d_model, d_ff)

    out = feed_forward(x, w1, b1, w2, b2)
    out = jax.block_until_ready(out)

    # Reference in plain f32 JAX (eval-mode dropout = identity). The kernel uses
    # bf16 MXU operands with f32 accumulation, so compare at bf16-ish tolerance.
    ref = jnp.maximum(x.reshape(-1, d_model) @ w1 + b1, 0.0) @ w2 + b2
    ref = ref.reshape(batch, seq, d_model)
    assert out.shape == (batch, seq, d_model)
    assert out.dtype == jnp.float32
    assert jnp.allclose(out, ref, atol=5e-2, rtol=5e-2), float(
        jnp.max(jnp.abs(out - ref)))

    print("KERNEL_OK")
</pallas_src>

<mosaic_0001>
module attributes {stable_mosaic.version = 11 : i64} {
  func.func @_ffn_kernel(%arg0: i32, %arg1: i32, %arg2: memref<16x256xbf16, #tpu.memory_space<vmem>>, %arg3: memref<256x256xbf16, #tpu.memory_space<vmem>>, %arg4: memref<1x256xbf16, #tpu.memory_space<vmem>>, %arg5: memref<256x256xbf16, #tpu.memory_space<vmem>>, %arg6: memref<1x256xf32, #tpu.memory_space<vmem>>, %arg7: memref<16x256xf32, #tpu.memory_space<vmem>>) attributes {dimension_semantics = [#tpu.dimension_semantics<parallel>, #tpu.dimension_semantics<arbitrary>], iteration_bounds = array<i64: 1, 1>, scalar_prefetch = 0 : i64, scratch_operands = 0 : i64, tpu.core_type = #tpu.core_type<tc>, window_params = [{transform_indices = @transform_0, window_bounds = array<i64: 16, 256>}, {transform_indices = @transform_1, window_bounds = array<i64: 256, 256>}, {transform_indices = @transform_2, window_bounds = array<i64: 1, 256>}, {transform_indices = @transform_3, window_bounds = array<i64: 256, 256>}, {pipeline_mode = #tpu.pipeline_mode<synchronous>, transform_indices = @transform_4, window_bounds = array<i64: 1, 256>}, {transform_indices = @transform_5, window_bounds = array<i64: 16, 256>}]} {
    %c0_i32 = arith.constant 0 : i32
    %0 = arith.cmpi eq, %arg1, %c0_i32 : i32
    %1 = arith.extui %0 : i1 to i32
    %c0_i32_0 = arith.constant 0 : i32
    %2 = arith.cmpi ne, %1, %c0_i32_0 : i32
    scf.if %2 {
      %c0_14 = arith.constant 0 : index
      %c0_15 = arith.constant 0 : index
      %17 = vector.load %arg6[%c0_14, %c0_15] : memref<1x256xf32, #tpu.memory_space<vmem>>, vector<1x256xf32>
      %18 = vector.shape_cast %17 : vector<1x256xf32> to vector<1x256xf32>
      %19 = vector.broadcast %18 : vector<1x256xf32> to vector<16x256xf32>
      %c0_16 = arith.constant 0 : index
      %c0_17 = arith.constant 0 : index
      %20 = vector.load %arg7[%c0_16, %c0_17] : memref<16x256xf32, #tpu.memory_space<vmem>>, vector<16x256xf32>
      tpu.vector_store %arg7[%c0_16, %c0_17], %19 {strides = array<i32>} : memref<16x256xf32, #tpu.memory_space<vmem>>, vector<16x256xf32>,
    } else {
    }
    %c0 = arith.constant 0 : index
    %c0_1 = arith.constant 0 : index
    %3 = vector.load %arg2[%c0, %c0_1] : memref<16x256xbf16, #tpu.memory_space<vmem>>, vector<16x256xbf16>
    %c0_2 = arith.constant 0 : index
    %c0_3 = arith.constant 0 : index
    %4 = vector.load %arg3[%c0_2, %c0_3] : memref<256x256xbf16, #tpu.memory_space<vmem>>, vector<256x256xbf16>
    %cst = arith.constant dense<0.000000e+00> : vector<16x256xf32>
    %5 = tpu.matmul %3, %4, %cst {dimension_numbers = #tpu.dot_dimension_numbers<[1], [0], [0], [1], [0, 0, 1, 1], [], []>} : vector<16x256xbf16>, vector<256x256xbf16>, vector<16x256xf32> -> vector<16x256xf32>
    %6 = arith.truncf %5 : vector<16x256xf32> to vector<16x256xbf16>
    %c0_4 = arith.constant 0 : index
    %c0_5 = arith.constant 0 : index
    %7 = vector.load %arg4[%c0_4, %c0_5] : memref<1x256xbf16, #tpu.memory_space<vmem>>, vector<1x256xbf16>
    %8 = vector.broadcast %7 : vector<1x256xbf16> to vector<16x256xbf16>
    %9 = arith.addf %6, %8 : vector<16x256xbf16>
    %cst_6 = arith.constant 0.000000e+00 : bf16
    %10 = vector.broadcast %cst_6 : bf16 to vector<16x256xbf16>
    %11 = arith.maximumf %9, %10 : vector<16x256xbf16>
    %c0_7 = arith.constant 0 : index
    %c0_8 = arith.constant 0 : index
    %12 = vector.load %arg7[%c0_7, %c0_8] : memref<16x256xf32, #tpu.memory_space<vmem>>, vector<16x256xf32>
    %c0_9 = arith.constant 0 : index
    %c0_10 = arith.constant 0 : index
    %13 = vector.load %arg5[%c0_9, %c0_10] : memref<256x256xbf16, #tpu.memory_space<vmem>>, vector<256x256xbf16>
    %cst_11 = arith.constant dense<0.000000e+00> : vector<16x256xf32>
    %14 = tpu.matmul %11, %13, %cst_11 {dimension_numbers = #tpu.dot_dimension_numbers<[1], [0], [0], [1], [0, 0, 1, 1], [], []>} : vector<16x256xbf16>, vector<256x256xbf16>, vector<16x256xf32> -> vector<16x256xf32>
    %15 = arith.addf %12, %14 : vector<16x256xf32>
    %c0_12 = arith.constant 0 : index
    %c0_13 = arith.constant 0 : index
    %16 = vector.load %arg7[%c0_12, %c0_13] : memref<16x256xf32, #tpu.memory_space<vmem>>, vector<16x256xf32>
    tpu.vector_store %arg7[%c0_12, %c0_13], %15 {strides = array<i32>} : memref<16x256xf32, #tpu.memory_space<vmem>>, vector<16x256xf32>,
    return
  }
  func.func @transform_0(%arg0: i32, %arg1: i32) -> (i32, i32) {
    %c0_i32 = arith.constant 0 : i32
    %c0_i32_0 = arith.constant 0 : i32
    return %arg0, %c0_i32 : i32, i32
  }
  func.func @transform_1(%arg0: i32, %arg1: i32) -> (i32, i32) {
    %c0_i32 = arith.constant 0 : i32
    %c0_i32_0 = arith.constant 0 : i32
    return %c0_i32, %arg1 : i32, i32
  }
  func.func @transform_2(%arg0: i32, %arg1: i32) -> (i32, i32) {
    %c0_i32 = arith.constant 0 : i32
    %c0_i32_0 = arith.constant 0 : i32
    return %c0_i32, %arg1 : i32, i32
  }
  func.func @transform_3(%arg0: i32, %arg1: i32) -> (i32, i32) {
    %c0_i32 = arith.constant 0 : i32
    %c0_i32_0 = arith.constant 0 : i32
    return %arg1, %c0_i32 : i32, i32
  }
  func.func @transform_4(%arg0: i32, %arg1: i32) -> (i32, i32) {
    %c0_i32 = arith.constant 0 : i32
    %c0_i32_0 = arith.constant 0 : i32
    %c0_i32_1 = arith.constant 0 : i32
    return %c0_i32, %c0_i32_0 : i32, i32
  }
  func.func @transform_5(%arg0: i32, %arg1: i32) -> (i32, i32) {
    %c0_i32 = arith.constant 0 : i32
    %c0_i32_0 = arith.constant 0 : i32
    return %arg0, %c0_i32 : i32, i32
  }
}

</mosaic_0001>

<llo_original>
// kernel: feed_forward.1
$region0: #{feed_forward.1}
  #allocation0 [shape = 'u32[]', space=smem, size = 0x4, offset = 0x4, fixed_abs, tag = 'smem constant byte address 0x4 - core index']
  #allocation1 [shape = 'u32[72,128]{1,0:T(1,128)}', space=vmem, size = 0x9000, scoped, tag = 'internal scratch']
  %s0 = inlined_call_operand.vmem [shape: bf16[16,256], index: 0, kind: input, shape index: {}]
  %s1 = inlined_call_operand.vmem [shape: bf16[256,256], index: 1, kind: input, shape index: {}]
  %s2 = inlined_call_operand.vmem [shape: bf16[1,256], index: 2, kind: input, shape index: {}]
  %s3 = inlined_call_operand.vmem [shape: bf16[256,256], index: 3, kind: input, shape index: {}]
  %s4 = inlined_call_operand.vmem [shape: f32[1,256], index: 4, kind: input, shape index: {}]
  %s5 = inlined_call_operand.vmem [shape: f32[16,256], index: 5, kind: output, shape index: {}]
  %s6 = sld [smem:[#allocation0]]
  $region34: #{feed_forward.1} parent=0
    _
  %s8 = ssub.s32 1, %s6
  %s9 = scalar_select 0, %s8, %s6
  // Predicated region
  $region2: #{feed_forward.1} parent=0 // pred_check
    _
  $region3: #{feed_forward.1} parent=0 // pred_check_branch
    %11 = sbr.rel (0) target = $region5
  $region4: #{feed_forward.1} parent=0 // pred_region
    _
  $region5: #{feed_forward.1} parent=0 // pred_fallthru
    _
  // Predicated region
  $region6: #{feed_forward.1} parent=0 // pred_check
    _
  $region7: #{feed_forward.1} parent=0 // pred_check_branch
    %13 = sbr.rel (0) target = $region9
  $region8: #{feed_forward.1} parent=0 // pred_region
    _
  $region9: #{feed_forward.1} parent=0 // pred_fallthru
    _
  // Predicated region
  $region10: #{feed_forward.1} parent=0 // pred_check
    _
  $region11: #{feed_forward.1} parent=0 // pred_check_branch
    %15 = sbr.rel (0) target = $region13
  $region12: #{feed_forward.1} parent=0 // pred_region
    _
  $region13: #{feed_forward.1} parent=0 // pred_fallthru
    _
  // Predicated region
  $region14: #{feed_forward.1} parent=0 // pred_check
    _
  $region15: #{feed_forward.1} parent=0 // pred_check_branch
    %17 = sbr.rel (0) target = $region17
  $region16: #{feed_forward.1} parent=0 // pred_region
    _
  $region17: #{feed_forward.1} parent=0 // pred_fallthru
    _
  // Predicated region
  $region18: #{feed_forward.1} parent=0 // pred_check
    _
  $region19: #{feed_forward.1} parent=0 // pred_check_branch
    %19 = sbr.rel (0) target = $region21
  $region20: #{feed_forward.1} parent=0 // pred_region
    _
  $region21: #{feed_forward.1} parent=0 // pred_fallthru
    _
  %p20 = scmp.eq.s32.totalorder 0, 0
  // Predicated region
  $region22: #{feed_forward.1} parent=0 // pred_check
    %p21 = pneg %p20
  $region23: #{feed_forward.1} parent=0 // pred_check_branch
    %23 = sbr.rel (%p21) target = $region25
  $region24: #{feed_forward.1} parent=0 // pred_region
    %v24 = vld [vmem:[%s4] sm:$0x3]
    %v26 = vperm.slane %v24, 0
    %v27 = vperm.slane %v24, 1
    %30 = vst [vmem:[%s5] sm:$0xff] %v26
    %31 = vst [vmem:[%s5 + $0x8] sm:$0xff] %v27
    %32 = vst [vmem:[%s5 + $0x10] sm:$0xff] %v26
    %33 = vst [vmem:[%s5 + $0x18] sm:$0xff] %v27
  $region25: #{feed_forward.1} parent=0 // pred_fallthru
    _
  %v34 = vld [vmem:[%s0] sm:$0xff]
  %v35 = vld [vmem:[%s0 + $0x8] sm:$0xff]
  %v36 = vld [vmem:[%s1] sm:$0xff]
  %v37 = vld [vmem:[%s1 + $0x8] sm:$0xff]
  %v38 = vld [vmem:[%s1 + $0x10] sm:$0xff]
  %v39 = vld [vmem:[%s1 + $0x18] sm:$0xff]
  %v40 = vld [vmem:[%s1 + $0x20] sm:$0xff]
  %v41 = vld [vmem:[%s1 + $0x28] sm:$0xff]
  %v42 = vld [vmem:[%s1 + $0x30] sm:$0xff]
  %v43 = vld [vmem:[%s1 + $0x38] sm:$0xff]
  %v44 = vld [vmem:[%s1 + $0x40] sm:$0xff]
  %v45 = vld [vmem:[%s1 + $0x48] sm:$0xff]
  %v46 = vld [vmem:[%s1 + $0x50] sm:$0xff]
  %v47 = vld [vmem:[%s1 + $0x58] sm:$0xff]
  %v48 = vld [vmem:[%s1 + $0x60] sm:$0xff]
  %v49 = vld [vmem:[%s1 + $0x68] sm:$0xff]
  %v50 = vld [vmem:[%s1 + $0x70] sm:$0xff]
  %v51 = vld [vmem:[%s1 + $0x78] sm:$0xff]
  %v52 = vld [vmem:[%s1 + $0x80] sm:$0xff]
  %v53 = vld [vmem:[%s1 + $0x88] sm:$0xff]
  %v54 = vld [vmem:[%s1 + $0x90] sm:$0xff]
  %v55 = vld [vmem:[%s1 + $0x98] sm:$0xff]
  %v56 = vld [vmem:[%s1 + $0xa0] sm:$0xff]
  %v57 = vld [vmem:[%s1 + $0xa8] sm:$0xff]
  %v58 = vld [vmem:[%s1 + $0xb0] sm:$0xff]
  %v59 = vld [vmem:[%s1 + $0xb8] sm:$0xff]
  %v60 = vld [vmem:[%s1 + $0xc0] sm:$0xff]
  %v61 = vld [vmem:[%s1 + $0xc8] sm:$0xff]
  %v62 = vld [vmem:[%s1 + $0xd0] sm:$0xff]
  %v63 = vld [vmem:[%s1 + $0xd8] sm:$0xff]
  %v64 = vld [vmem:[%s1 + $0xe0] sm:$0xff]
  %v65 = vld [vmem:[%s1 + $0xe8] sm:$0xff]
  %v66 = vld [vmem:[%s1 + $0xf0] sm:$0xff]
  %v67 = vld [vmem:[%s1 + $0xf8] sm:$0xff]
  %v70 = vunpack.c.l.b16 %v34
  %v71 = vunpack.c.h.b16 %v34
  %v72 = vunpack.c.l.b16 %v35
  %v73 = vunpack.c.h.b16 %v35
  %v74 = vpack.c.b16 %v72, %v70
  %v75 = vpack.c.b16 %v73, %v71
  %v110 = vunpack.c.l.b16 %v36
  %v111 = vunpack.c.h.b16 %v36
  %v112 = vunpack.c.l.b16 %v37
  %v113 = vunpack.c.h.b16 %v37
  %v114 = vunpack.c.l.b16 %v38
  %v115 = vunpack.c.h.b16 %v38
  %v116 = vunpack.c.l.b16 %v39
  %v117 = vunpack.c.h.b16 %v39
  %v118 = vunpack.c.l.b16 %v40
  %v119 = vunpack.c.h.b16 %v40
  %v120 = vunpack.c.l.b16 %v41
  %v121 = vunpack.c.h.b16 %v41
  %v122 = vunpack.c.l.b16 %v42
  %v123 = vunpack.c.h.b16 %v42
  %v124 = vunpack.c.l.b16 %v43
  %v125 = vunpack.c.h.b16 %v43
  %v126 = vunpack.c.l.b16 %v44
  %v127 = vunpack.c.h.b16 %v44
  %v128 = vunpack.c.l.b16 %v45
  %v129 = vunpack.c.h.b16 %v45
  %v130 = vunpack.c.l.b16 %v46
  %v131 = vunpack.c.h.b16 %v46
  %v132 = vunpack.c.l.b16 %v47
  %v133 = vunpack.c.h.b16 %v47
  %v134 = vunpack.c.l.b16 %v48
  %v135 = vunpack.c.h.b16 %v48
  %v136 = vunpack.c.l.b16 %v49
  %v137 = vunpack.c.h.b16 %v49
  %v138 = vunpack.c.l.b16 %v50
  %v139 = vunpack.c.h.b16 %v50
  %v140 = vunpack.c.l.b16 %v51
  %v141 = vunpack.c.h.b16 %v51
  %v142 = vunpack.c.l.b16 %v52
  %v143 = vunpack.c.h.b16 %v52
  %v144 = vunpack.c.l.b16 %v53
  %v145 = vunpack.c.h.b16 %v53
  %v146 = vunpack.c.l.b16 %v54
  %v147 = vunpack.c.h.b16 %v54
  %v148 = vunpack.c.l.b16 %v55
  %v149 = vunpack.c.h.b16 %v55
  %v150 = vunpack.c.l.b16 %v56
  %v151 = vunpack.c.h.b16 %v56
  %v152 = vunpack.c.l.b16 %v57
  %v153 = vunpack.c.h.b16 %v57
  %v154 = vunpack.c.l.b16 %v58
  %v155 = vunpack.c.h.b16 %v58
  %v156 = vunpack.c.l.b16 %v59
  %v157 = vunpack.c.h.b16 %v59
  %v158 = vunpack.c.l.b16 %v60
  %v159 = vunpack.c.h.b16 %v60
  %v160 = vunpack.c.l.b16 %v61
  %v161 = vunpack.c.h.b16 %v61
  %v162 = vunpack.c.l.b16 %v62
  %v163 = vunpack.c.h.b16 %v62
  %v164 = vunpack.c.l.b16 %v63
  %v165 = vunpack.c.h.b16 %v63
  %v166 = vunpack.c.l.b16 %v64
  %v167 = vunpack.c.h.b16 %v64
  %v168 = vunpack.c.l.b16 %v65
  %v169 = vunpack.c.h.b16 %v65
  %v170 = vunpack.c.l.b16 %v66
  %v171 = vunpack.c.h.b16 %v66
  %v172 = vunpack.c.l.b16 %v67
  %v173 = vunpack.c.h.b16 %v67
  %v174 = vpack.c.b16 %v112, %v110
  %v175 = vpack.c.b16 %v113, %v111
  %v176 = vpack.c.b16 %v116, %v114
  %v177 = vpack.c.b16 %v117, %v115
  %v178 = vpack.c.b16 %v120, %v118
  %v179 = vpack.c.b16 %v121, %v119
  %v180 = vpack.c.b16 %v124, %v122
  %v181 = vpack.c.b16 %v125, %v123
  %v182 = vpack.c.b16 %v128, %v126
  %v183 = vpack.c.b16 %v129, %v127
  %v184 = vpack.c.b16 %v132, %v130
  %v185 = vpack.c.b16 %v133, %v131
  %v186 = vpack.c.b16 %v136, %v134
  %v187 = vpack.c.b16 %v137, %v135
  %v188 = vpack.c.b16 %v140, %v138
  %v189 = vpack.c.b16 %v141, %v139
  %v190 = vpack.c.b16 %v144, %v142
  %v191 = vpack.c.b16 %v145, %v143
  %v192 = vpack.c.b16 %v148, %v146
  %v193 = vpack.c.b16 %v149, %v147
  %v194 = vpack.c.b16 %v152, %v150
  %v195 = vpack.c.b16 %v153, %v151
  %v196 = vpack.c.b16 %v156, %v154
  %v197 = vpack.c.b16 %v157, %v155
  %v198 = vpack.c.b16 %v160, %v158
  %v199 = vpack.c.b16 %v161, %v159
  %v200 = vpack.c.b16 %v164, %v162
  %v201 = vpack.c.b16 %v165, %v163
  %v202 = vpack.c.b16 %v168, %v166
  %v203 = vpack.c.b16 %v169, %v167
  %v204 = vpack.c.b16 %v172, %v170
  %v205 = vpack.c.b16 %v173, %v171
  %238 = vmatpush.bf16.msra.mxu0 %v188
  %239 = vmatpush.bf16.msra.mxu0 %v186
  %240 = vmatpush.bf16.msra.mxu0 %v184
  %241 = vmatpush.bf16.msra.mxu0 %v182
  %242 = vmatpush.bf16.msra.mxu0 %v180
  %243 = vmatpush.bf16.msra.mxu0 %v178
  %244 = vmatpush.bf16.msra.mxu0 %v176
  %245 = vmatpush.bf16.msra.mxu0 %v174
  %246 = vmatmul.bf16.gmra.mxu0 %v74
  %v247 = vpop.f32.mrf.mxu0
  %v248 = vadd.f32 0.0, %v247
  %v249 = vpop.f32.mrf.mxu0
  %v250 = vadd.f32 0.0, %v249
  %251 = vdwg.mxu0
  %252 = vmatpush.bf16.msra.mxu0 %v204
  %253 = vmatpush.bf16.msra.mxu0 %v202
  %254 = vmatpush.bf16.msra.mxu0 %v200
  %255 = vmatpush.bf16.msra.mxu0 %v198
  %256 = vmatpush.bf16.msra.mxu0 %v196
  %257 = vmatpush.bf16.msra.mxu0 %v194
  %258 = vmatpush.bf16.msra.mxu0 %v192
  %259 = vmatpush.bf16.msra.mxu0 %v190
  %260 = vmatmul.bf16.gmra.mxu0 %v75
  %v261 = vpop.f32.mrf.mxu0
  %v262 = vadd.f32 %v248, %v261
  %v263 = vpop.f32.mrf.mxu0
  %v264 = vadd.f32 %v250, %v263
  %265 = vdwg.mxu0
  %266 = vmatpush.bf16.msra.mxu0 %v189
  %267 = vmatpush.bf16.msra.mxu0 %v187
  %268 = vmatpush.bf16.msra.mxu0 %v185
  %269 = vmatpush.bf16.msra.mxu0 %v183
  %270 = vmatpush.bf16.msra.mxu0 %v181
  %271 = vmatpush.bf16.msra.mxu0 %v179
  %272 = vmatpush.bf16.msra.mxu0 %v177
  %273 = vmatpush.bf16.msra.mxu0 %v175
  %274 = vmatmul.bf16.gmra.mxu0 %v74
  %v275 = vpop.f32.mrf.mxu0
  %v276 = vadd.f32 0.0, %v275
  %v277 = vpop.f32.mrf.mxu0
  %v278 = vadd.f32 0.0, %v277
  %279 = vdwg.mxu0
  %280 = vmatpush.bf16.msra.mxu0 %v205
  %281 = vmatpush.bf16.msra.mxu0 %v203
  %282 = vmatpush.bf16.msra.mxu0 %v201
  %283 = vmatpush.bf16.msra.mxu0 %v199
  %284 = vmatpush.bf16.msra.mxu0 %v197
  %285 = vmatpush.bf16.msra.mxu0 %v195
  %286 = vmatpush.bf16.msra.mxu0 %v193
  %287 = vmatpush.bf16.msra.mxu0 %v191
  %288 = vmatmul.bf16.gmra.mxu0 %v75
  %v289 = vpop.f32.mrf.mxu0
  %v290 = vadd.f32 %v276, %v289
  %v291 = vpop.f32.mrf.mxu0
  %v292 = vadd.f32 %v278, %v291
  %293 = vdwg.mxu0
  %v294 = vpack.c.bf16 %v290, %v262
  %v295 = vpack.c.bf16 %v292, %v264
  %v296 = vld [vmem:[%s2] sm:$0x3]
  %298 = vst [vmem:[#allocation1] ss:$9 sm:$0xff] %v296
  %v299 = vld [vmem:[#allocation1] sm:$0xff]
  %v300 = vld [vmem:[#allocation1 + $0x9] sm:$0xff]
  %v301 = vpack.i.b16 %v299, %v299
  %v303 = vperm.slane %v301, 0
  %v304 = vpack.i.b16 %v300, %v300
  %v306 = vperm.slane %v304, 0
  %v307 = vunpack.c.l.bf16 %v294
  %v308 = vunpack.c.h.bf16 %v294
  %v309 = vunpack.c.l.bf16 %v295
  %v310 = vunpack.c.h.bf16 %v295
  %v311 = vunpack.c.l.bf16 %v303
  %v312 = vunpack.c.l.bf16 %v306
  %v313 = vadd.f32 %v307, %v311
  %v314 = vadd.f32 %v308, %v312
  %v315 = vadd.f32 %v309, %v311
  %v316 = vadd.f32 %v310, %v312
  %v317 = vpack.c.bf16 %v314, %v313
  %v318 = vpack.c.bf16 %v316, %v315
  %v319 = vunpack.c.l.bf16 %v317
  %v320 = vunpack.c.h.bf16 %v317
  %v321 = vunpack.c.l.bf16 %v318
  %v322 = vunpack.c.h.bf16 %v318
  %v323 = vmax.f32 %v319, 0.0
  %v324 = vmax.f32 %v320, 0.0
  %v325 = vmax.f32 %v321, 0.0
  %v326 = vmax.f32 %v322, 0.0
  %v327 = vpack.c.bf16 %v325, %v323
  %v328 = vpack.c.bf16 %v326, %v324
  %v329 = vld [vmem:[%s5] sm:$0xff]
  %v330 = vld [vmem:[%s5 + $0x8] sm:$0xff]
  %v331 = vld [vmem:[%s5 + $0x10] sm:$0xff]
  %v332 = vld [vmem:[%s5 + $0x18] sm:$0xff]
  %v333 = vld [vmem:[%s3] sm:$0xff]
  %v334 = vld [vmem:[%s3 + $0x8] sm:$0xff]
  %v335 = vld [vmem:[%s3 + $0x10] sm:$0xff]
  %v336 = vld [vmem:[%s3 + $0x18] sm:$0xff]
  %v337 = vld [vmem:[%s3 + $0x20] sm:$0xff]
  %v338 = vld [vmem:[%s3 + $0x28] sm:$0xff]
  %v339 = vld [vmem:[%s3 + $0x30] sm:$0xff]
  %v340 = vld [vmem:[%s3 + $0x38] sm:$0xff]
  %v341 = vld [vmem:[%s3 + $0x40] sm:$0xff]
  %v342 = vld [vmem:[%s3 + $0x48] sm:$0xff]
  %v343 = vld [vmem:[%s3 + $0x50] sm:$0xff]
  %v344 = vld [vmem:[%s3 + $0x58] sm:$0xff]
  %v345 = vld [vmem:[%s3 + $0x60] sm:$0xff]
  %v346 = vld [vmem:[%s3 + $0x68] sm:$0xff]
  %v347 = vld [vmem:[%s3 + $0x70] sm:$0xff]
  %v348 = vld [vmem:[%s3 + $0x78] sm:$0xff]
  %v349 = vld [vmem:[%s3 + $0x80] sm:$0xff]
  %v350 = vld [vmem:[%s3 + $0x88] sm:$0xff]
  %v351 = vld [vmem:[%s3 + $0x90] sm:$0xff]
  %v352 = vld [vmem:[%s3 + $0x98] sm:$0xff]
  %v353 = vld [vmem:[%s3 + $0xa0] sm:$0xff]
  %v354 = vld [vmem:[%s3 + $0xa8] sm:$0xff]
  %v355 = vld [vmem:[%s3 + $0xb0] sm:$0xff]
  %v356 = vld [vmem:[%s3 + $0xb8] sm:$0xff]
  %v357 = vld [vmem:[%s3 + $0xc0] sm:$0xff]
  %v358 = vld [vmem:[%s3 + $0xc8] sm:$0xff]
  %v359 = vld [vmem:[%s3 + $0xd0] sm:$0xff]
  %v360 = vld [vmem:[%s3 + $0xd8] sm:$0xff]
  %v361 = vld [vmem:[%s3 + $0xe0] sm:$0xff]
  %v362 = vld [vmem:[%s3 + $0xe8] sm:$0xff]
  %v363 = vld [vmem:[%s3 + $0xf0] sm:$0xff]
  %v364 = vld [vmem:[%s3 + $0xf8] sm:$0xff]
  %v397 = vunpack.c.l.b16 %v333
  %v398 = vunpack.c.h.b16 %v333
  %v399 = vunpack.c.l.b16 %v334
  %v400 = vunpack.c.h.b16 %v334
  %v401 = vunpack.c.l.b16 %v335
  %v402 = vunpack.c.h.b16 %v335
  %v403 = vunpack.c.l.b16 %v336
  %v404 = vunpack.c.h.b16 %v336
  %v405 = vunpack.c.l.b16 %v337
  %v406 = vunpack.c.h.b16 %v337
  %v407 = vunpack.c.l.b16 %v338
  %v408 = vunpack.c.h.b16 %v338
  %v409 = vunpack.c.l.b16 %v339
  %v410 = vunpack.c.h.b16 %v339
  %v411 = vunpack.c.l.b16 %v340
  %v412 = vunpack.c.h.b16 %v340
  %v413 = vunpack.c.l.b16 %v341
  %v414 = vunpack.c.h.b16 %v341
  %v415 = vunpack.c.l.b16 %v342
  %v416 = vunpack.c.h.b16 %v342
  %v417 = vunpack.c.l.b16 %v343
  %v418 = vunpack.c.h.b16 %v343
  %v419 = vunpack.c.l.b16 %v344
  %v420 = vunpack.c.h.b16 %v344
  %v421 = vunpack.c.l.b16 %v345
  %v422 = vunpack.c.h.b16 %v345
  %v423 = vunpack.c.l.b16 %v346
  %v424 = vunpack.c.h.b16 %v346
  %v425 = vunpack.c.l.b16 %v347
  %v426 = vunpack.c.h.b16 %v347
  %v427 = vunpack.c.l.b16 %v348
  %v428 = vunpack.c.h.b16 %v348
  %v429 = vunpack.c.l.b16 %v349
  %v430 = vunpack.c.h.b16 %v349
  %v431 = vunpack.c.l.b16 %v350
  %v432 = vunpack.c.h.b16 %v350
  %v433 = vunpack.c.l.b16 %v351
  %v434 = vunpack.c.h.b16 %v351
  %v435 = vunpack.c.l.b16 %v352
  %v436 = vunpack.c.h.b16 %v352
  %v437 = vunpack.c.l.b16 %v353
  %v438 = vunpack.c.h.b16 %v353
  %v439 = vunpack.c.l.b16 %v354
  %v440 = vunpack.c.h.b16 %v354
  %v441 = vunpack.c.l.b16 %v355
  %v442 = vunpack.c.h.b16 %v355
  %v443 = vunpack.c.l.b16 %v356
  %v444 = vunpack.c.h.b16 %v356
  %v445 = vunpack.c.l.b16 %v357
  %v446 = vunpack.c.h.b16 %v357
  %v447 = vunpack.c.l.b16 %v358
  %v448 = vunpack.c.h.b16 %v358
  %v449 = vunpack.c.l.b16 %v359
  %v450 = vunpack.c.h.b16 %v359
  %v451 = vunpack.c.l.b16 %v360
  %v452 = vunpack.c.h.b16 %v360
  %v453 = vunpack.c.l.b16 %v361
  %v454 = vunpack.c.h.b16 %v361
  %v455 = vunpack.c.l.b16 %v362
  %v456 = vunpack.c.h.b16 %v362
  %v457 = vunpack.c.l.b16 %v363
  %v458 = vunpack.c.h.b16 %v363
  %v459 = vunpack.c.l.b16 %v364
  %v460 = vunpack.c.h.b16 %v364
  %v461 = vpack.c.b16 %v399, %v397
  %v462 = vpack.c.b16 %v400, %v398
  %v463 = vpack.c.b16 %v403, %v401
  %v464 = vpack.c.b16 %v404, %v402
  %v465 = vpack.c.b16 %v407, %v405
  %v466 = vpack.c.b16 %v408, %v406
  %v467 = vpack.c.b16 %v411, %v409
  %v468 = vpack.c.b16 %v412, %v410
  %v469 = vpack.c.b16 %v415, %v413
  %v470 = vpack.c.b16 %v416, %v414
  %v471 = vpack.c.b16 %v419, %v417
  %v472 = vpack.c.b16 %v420, %v418
  %v473 = vpack.c.b16 %v423, %v421
  %v474 = vpack.c.b16 %v424, %v422
  %v475 = vpack.c.b16 %v427, %v425
  %v476 = vpack.c.b16 %v428, %v426
  %v477 = vpack.c.b16 %v431, %v429
  %v478 = vpack.c.b16 %v432, %v430
  %v479 = vpack.c.b16 %v435, %v433
  %v480 = vpack.c.b16 %v436, %v434
  %v481 = vpack.c.b16 %v439, %v437
  %v482 = vpack.c.b16 %v440, %v438
  %v483 = vpack.c.b16 %v443, %v441
  %v484 = vpack.c.b16 %v444, %v442
  %v485 = vpack.c.b16 %v447, %v445
  %v486 = vpack.c.b16 %v448, %v446
  %v487 = vpack.c.b16 %v451, %v449
  %v488 = vpack.c.b16 %v452, %v450
  %v489 = vpack.c.b16 %v455, %v453
  %v490 = vpack.c.b16 %v456, %v454
  %v491 = vpack.c.b16 %v459, %v457
  %v492 = vpack.c.b16 %v460, %v458
  %525 = vmatpush.bf16.msra.mxu0 %v475
  %526 = vmatpush.bf16.msra.mxu0 %v473
  %527 = vmatpush.bf16.msra.mxu0 %v471
  %528 = vmatpush.bf16.msra.mxu0 %v469
  %529 = vmatpush.bf16.msra.mxu0 %v467
  %530 = vmatpush.bf16.msra.mxu0 %v465
  %531 = vmatpush.bf16.msra.mxu0 %v463
  %532 = vmatpush.bf16.msra.mxu0 %v461
  %533 = vmatmul.bf16.gmra.mxu0 %v327
  %v534 = vpop.f32.mrf.mxu0
  %v535 = vadd.f32 0.0, %v534
  %v536 = vpop.f32.mrf.mxu0
  %v537 = vadd.f32 0.0, %v536
  %538 = vdwg.mxu0
  %539 = vmatpush.bf16.msra.mxu0 %v491
  %540 = vmatpush.bf16.msra.mxu0 %v489
  %541 = vmatpush.bf16.msra.mxu0 %v487
  %542 = vmatpush.bf16.msra.mxu0 %v485
  %543 = vmatpush.bf16.msra.mxu0 %v483
  %544 = vmatpush.bf16.msra.mxu0 %v481
  %545 = vmatpush.bf16.msra.mxu0 %v479
  %546 = vmatpush.bf16.msra.mxu0 %v477
  %547 = vmatmul.bf16.gmra.mxu0 %v328
  %v548 = vpop.f32.mrf.mxu0
  %v549 = vadd.f32 %v535, %v548
  %v550 = vpop.f32.mrf.mxu0
  %v551 = vadd.f32 %v537, %v550
  %552 = vdwg.mxu0
  %553 = vmatpush.bf16.msra.mxu0 %v476
  %554 = vmatpush.bf16.msra.mxu0 %v474
  %555 = vmatpush.bf16.msra.mxu0 %v472
  %556 = vmatpush.bf16.msra.mxu0 %v470
  %557 = vmatpush.bf16.msra.mxu0 %v468
  %558 = vmatpush.bf16.msra.mxu0 %v466
  %559 = vmatpush.bf16.msra.mxu0 %v464
  %560 = vmatpush.bf16.msra.mxu0 %v462
  %561 = vmatmul.bf16.gmra.mxu0 %v327
  %v562 = vpop.f32.mrf.mxu0
  %v563 = vadd.f32 0.0, %v562
  %v564 = vpop.f32.mrf.mxu0
  %v565 = vadd.f32 0.0, %v564
  %566 = vdwg.mxu0
  %567 = vmatpush.bf16.msra.mxu0 %v492
  %568 = vmatpush.bf16.msra.mxu0 %v490
  %569 = vmatpush.bf16.msra.mxu0 %v488
  %570 = vmatpush.bf16.msra.mxu0 %v486
  %571 = vmatpush.bf16.msra.mxu0 %v484
  %572 = vmatpush.bf16.msra.mxu0 %v482
  %573 = vmatpush.bf16.msra.mxu0 %v480
  %574 = vmatpush.bf16.msra.mxu0 %v478
  %575 = vmatmul.bf16.gmra.mxu0 %v328
  %v576 = vpop.f32.mrf.mxu0
  %v577 = vadd.f32 %v563, %v576
  %v578 = vpop.f32.mrf.mxu0
  %v579 = vadd.f32 %v565, %v578
  %580 = vdwg.mxu0
  %v581 = vadd.f32 %v329, %v549
  %v582 = vadd.f32 %v330, %v577
  %v583 = vadd.f32 %v331, %v551
  %v584 = vadd.f32 %v332, %v579
  %585 = vst [vmem:[%s5] sm:$0xff] %v581
  %586 = vst [vmem:[%s5 + $0x8] sm:$0xff] %v582
  %587 = vst [vmem:[%s5 + $0x10] sm:$0xff] %v583
  %588 = vst [vmem:[%s5 + $0x18] sm:$0xff] %v584
  // Predicated region
  $region26: #{feed_forward.1} parent=0 // pred_check
    _
  $region27: #{feed_forward.1} parent=0 // pred_check_branch
    %590 = sbr.rel (0) target = $region29
  $region28: #{feed_forward.1} parent=0 // pred_region
    _
  $region29: #{feed_forward.1} parent=0 // pred_fallthru
    _
  // Predicated region
  $region30: #{feed_forward.1} parent=0 // pred_check
    _
  $region31: #{feed_forward.1} parent=0 // pred_check_branch
    %592 = sbr.rel (0) target = $region33
  $region32: #{feed_forward.1} parent=0 // pred_region
    _
  $region33: #{feed_forward.1} parent=0 // pred_fallthru
    _

</llo_original>
